<compile_context>
chip_gen: v5e
topology: v5e:2x2
jax: 0.10.0
libtpu: 0.0.40
codegen_flags: <defaults>
</compile_context>

<pallas_src>
import functools

import jax
import jax.numpy as jnp
from jax.experimental import pallas as pl
from jax.experimental.pallas import tpu as pltpu


def _round_up(n, m):
    return ((n + m - 1) // m) * m


def mlp3_kernel(x_ref, w_ref, b_ref, o_ref, xpad_ref, *,
                dim_ini, dip, di, dim_sal, dsp):
    """One batch tile: x (TM, dim_ini) f32 -> log-probs (TM, dim_sal) f32."""
    wd = w_ref.dtype  # bf16 weight slab
    tm = x_ref.shape[0]

    # Zero-pad the feature dim to `dip` inside VMEM (cheap vreg stores).  Pad columns
    # are rewritten every step so the result is correct regardless of how grid steps
    # are split across TensorCores.
    if dip > dim_ini:
        xpad_ref[:, dim_ini:] = jnp.zeros((tm, dip - dim_ini), jnp.float32)
    xpad_ref[:, :dim_ini] = x_ref[...]
    x = xpad_ref[...]                                   # (TM, dip) f32

    # Static, sublane-aligned views into the packed slabs (no data movement).
    w1 = w_ref[0:dip, :]                                # (dip, di)
    w2 = w_ref[dip:dip + di, :]                         # (di, di)
    w3 = w_ref[dip + di:dip + 2 * di, :]                # (di, di), cols >= dim_sal zero
    b1 = b_ref[0:1, :]
    b2 = b_ref[1:2, :]
    b3 = b_ref[2:3, :dsp]

    # capa1 + ReLU  (bf16 MXU operands, f32 accumulation, f32 elementwise)
    h1 = jnp.dot(x.astype(wd), w1, preferred_element_type=jnp.float32) + b1
    h1 = jnp.maximum(h1, 0.0)

    # capa2 + ReLU
    h2 = jnp.dot(h1.astype(wd), w2, preferred_element_type=jnp.float32) + b2
    h2 = jnp.maximum(h2, 0.0)

    # capa3: full-width MXU matmul, then keep only the first dsp (=8) columns so the
    # softmax transcendental/reduce work runs over 8 lanes instead of 128.
    logits = jnp.dot(h2.astype(wd), w3, preferred_element_type=jnp.float32)
    logits = logits[:, :dsp] + b3                       # (TM, dsp)

    # Mask padded logit columns so they don't perturb log_softmax.
    col = jax.lax.broadcasted_iota(jnp.int32, logits.shape, 1)
    logits = jnp.where(col < dim_sal, logits, -jnp.inf)

    # Numerically stable log_softmax over the last dim.
    m = jnp.max(logits, axis=-1, keepdims=True)
    shifted = logits - m
    lse = jnp.log(jnp.sum(jnp.exp(shifted), axis=-1, keepdims=True))

    # Compact store: only the dim_sal useful columns hit HBM.
    o_ref[...] = (shifted - lse)[:, :dim_sal]


def pack_params(params, dim_ini, dim_int, dim_sal, weight_dtype=jnp.bfloat16):
    """Pack 6 tiny tensors into 2 slabs (cuts per-call DMA descriptor count).

    Weights are (in_features, out_features) so the kernel computes y = x @ W + b.
    w1 rows padded to a multiple of 16 (bf16 sublane packing) so the in-kernel slab
    slices stay tile-aligned; w3/b3 lane-padded with zeros.
    """
    w1, b1, w2, b2, w3, b3 = params
    dip = _round_up(dim_ini, 16)

    w1p = jnp.zeros((dip, dim_int), weight_dtype).at[:dim_ini, :].set(
        w1.astype(weight_dtype))
    w2p = w2.astype(weight_dtype)
    w3p = jnp.zeros((dim_int, dim_int), weight_dtype).at[:, :dim_sal].set(
        w3.astype(weight_dtype))
    w_all = jnp.concatenate([w1p, w2p, w3p], axis=0)          # (dip + 2*di, di)

    b_all = jnp.zeros((8, dim_int), jnp.float32)
    b_all = b_all.at[0, :].set(b1)
    b_all = b_all.at[1, :].set(b2)
    b_all = b_all.at[2, :dim_sal].set(b3)
    return w_all, b_all


def mlp3_forward(x, w_all, b_all, *, dim_ini, dim_sal, tm=1024):
    """x: (B, dim_ini) f32. Returns (1, 1, B*dim_sal) like the PyTorch module."""
    B = x.shape[0]
    assert x.shape[1] == dim_ini
    di = w_all.shape[1]
    dip = w_all.shape[0] - 2 * di
    assert dim_sal <= di, "dim_sal must fit in one lane-padded logit tile"

    # Batch tile: large (amortizes ~0.35us/step pipeline overhead) but capped at
    # ceil(B/2) rounded to 8 so the grid has >= 2 steps and both v7x TCs get work.
    tm_eff = max(8, min(tm, _round_up(pl.cdiv(B, 2), 8)))
    grid = (pl.cdiv(B, tm_eff),)          # partial last block handled by Pallas

    dsp = min(di, _round_up(dim_sal, 8))  # 8-lane softmax slab
    kernel = functools.partial(mlp3_kernel, dim_ini=dim_ini, dip=dip, di=di,
                               dim_sal=dim_sal, dsp=dsp)

    out = pl.pallas_call(
        kernel,
        out_shape=jax.ShapeDtypeStruct((B, dim_sal), jnp.float32),
        grid=grid,
        in_specs=[
            pl.BlockSpec((tm_eff, dim_ini), lambda i: (i, 0)),     # x tile, no pads
            pl.BlockSpec((dip + 2 * di, di), lambda i: (0, 0)),    # resident weights
            pl.BlockSpec((8, di), lambda i: (0, 0)),               # resident biases
        ],
        out_specs=pl.BlockSpec((tm_eff, dim_sal), lambda i: (i, 0)),  # compact output
        scratch_shapes=[pltpu.VMEM((tm_eff, dip), jnp.float32)],   # padded-x staging
        compiler_params=pltpu.CompilerParams(
            dimension_semantics=("parallel",)),                     # split across TCs
    )(x, w_all, b_all)

    # Output is already exactly (B, dim_sal): the reshape is a free metadata op
    # (matches PyTorch's .reshape(1, 1, -1)); no strided slice, no extra HBM pass.
    return out.reshape(1, 1, -1)


def init_params(key, dim_ini=30, dim_int=128, dim_sal=5):
    """PyTorch-Linear-style init: U(-1/sqrt(fan_in), 1/sqrt(fan_in)); weights (in, out)."""
    ks = jax.random.split(key, 6)

    def lin(kw, kb, fan_in, fan_out):
        bound = 1.0 / jnp.sqrt(float(fan_in))
        w = jax.random.uniform(kw, (fan_in, fan_out), jnp.float32, -bound, bound)
        b = jax.random.uniform(kb, (fan_out,), jnp.float32, -bound, bound)
        return w, b

    w1, b1 = lin(ks[0], ks[1], dim_ini, dim_int)
    w2, b2 = lin(ks[2], ks[3], dim_int, dim_int)
    w3, b3 = lin(ks[4], ks[5], dim_int, dim_sal)
    return (w1, b1, w2, b2, w3, b3)


def reference_forward(x, params):
    """Plain-JAX reference with the same dtype policy (bf16 MXU operands, f32 accum)."""
    w1, b1, w2, b2, w3, b3 = params

    def mm(a, w):
        return jnp.dot(a.astype(jnp.bfloat16), w.astype(jnp.bfloat16),
                       preferred_element_type=jnp.float32)

    h = jnp.maximum(mm(x, w1) + b1, 0.0)
    h = jnp.maximum(mm(h, w2) + b2, 0.0)
    logits = mm(h, w3) + b3
    return jax.nn.log_softmax(logits, axis=-1).reshape(1, 1, -1)


if __name__ == "__main__":
    dim_ini, dim_int, dim_sal = 30, 128, 5
    batch = 64

    key = jax.random.PRNGKey(0)
    k_x, k_p = jax.random.split(key)
    x = jax.random.normal(k_x, (batch, dim_ini), dtype=jnp.float32)
    params = init_params(k_p, dim_ini, dim_int, dim_sal)
    w_all, b_all = pack_params(params, dim_ini, dim_int, dim_sal)

    out = mlp3_forward(x, w_all, b_all, dim_ini=dim_ini, dim_sal=dim_sal)
    out = jax.block_until_ready(out)

    ref = reference_forward(x, params)
    assert out.shape == (1, 1, batch * dim_sal), out.shape
    assert jnp.allclose(out, ref, atol=2e-3, rtol=2e-3), "mismatch vs. JAX reference"

    print("KERNEL_OK")
</pallas_src>

<mosaic_0001>
module attributes {stable_mosaic.version = 11 : i64} {
  func.func @mlp3_kernel(%arg0: i32, %arg1: memref<32x30xf32, #tpu.memory_space<vmem>>, %arg2: memref<288x128xbf16, #tpu.memory_space<vmem>>, %arg3: memref<8x128xf32, #tpu.memory_space<vmem>>, %arg4: memref<32x5xf32, #tpu.memory_space<vmem>>, %arg5: memref<32x32xf32, #tpu.memory_space<vmem>>) attributes {dimension_semantics = [#tpu.dimension_semantics<parallel>], iteration_bounds = array<i64: 2>, scalar_prefetch = 0 : i64, scratch_operands = 1 : i64, tpu.core_type = #tpu.core_type<tc>, window_params = [{transform_indices = @transform_0, window_bounds = array<i64: 32, 30>}, {pipeline_mode = #tpu.pipeline_mode<synchronous>, transform_indices = @transform_1, window_bounds = array<i64: 288, 128>}, {pipeline_mode = #tpu.pipeline_mode<synchronous>, transform_indices = @transform_2, window_bounds = array<i64: 8, 128>}, {transform_indices = @transform_3, window_bounds = array<i64: 32, 5>}]} {
    %cst = arith.constant 0.000000e+00 : f32
    %0 = vector.broadcast %cst : f32 to vector<32x2xf32>
    %c0 = arith.constant 0 : index
    %c30 = arith.constant 30 : index
    %1 = vector.load %arg5[%c0, %c30] : memref<32x32xf32, #tpu.memory_space<vmem>>, vector<32x2xf32>
    tpu.vector_store %arg5[%c0, %c30], %0 {strides = array<i32>} : memref<32x32xf32, #tpu.memory_space<vmem>>, vector<32x2xf32>,
    %c0_0 = arith.constant 0 : index
    %c0_1 = arith.constant 0 : index
    %2 = vector.load %arg1[%c0_0, %c0_1] : memref<32x30xf32, #tpu.memory_space<vmem>>, vector<32x30xf32>
    %c0_2 = arith.constant 0 : index
    %c0_3 = arith.constant 0 : index
    %3 = vector.load %arg5[%c0_2, %c0_3] : memref<32x32xf32, #tpu.memory_space<vmem>>, vector<32x30xf32>
    tpu.vector_store %arg5[%c0_2, %c0_3], %2 {strides = array<i32>} : memref<32x32xf32, #tpu.memory_space<vmem>>, vector<32x30xf32>,
    %c0_4 = arith.constant 0 : index
    %c0_5 = arith.constant 0 : index
    %4 = vector.load %arg5[%c0_4, %c0_5] : memref<32x32xf32, #tpu.memory_space<vmem>>, vector<32x32xf32>
    %c0_6 = arith.constant 0 : index
    %c0_7 = arith.constant 0 : index
    %5 = vector.load %arg2[%c0_6, %c0_7] : memref<288x128xbf16, #tpu.memory_space<vmem>>, vector<32x128xbf16>
    %c32 = arith.constant 32 : index
    %c0_8 = arith.constant 0 : index
    %6 = vector.load %arg2[%c32, %c0_8] : memref<288x128xbf16, #tpu.memory_space<vmem>>, vector<128x128xbf16>
    %c160 = arith.constant 160 : index
    %c0_9 = arith.constant 0 : index
    %7 = vector.load %arg2[%c160, %c0_9] : memref<288x128xbf16, #tpu.memory_space<vmem>>, vector<128x128xbf16>
    %c0_10 = arith.constant 0 : index
    %c0_11 = arith.constant 0 : index
    %8 = vector.load %arg3[%c0_10, %c0_11] : memref<8x128xf32, #tpu.memory_space<vmem>>, vector<1x128xf32>
    %c1 = arith.constant 1 : index
    %c0_12 = arith.constant 0 : index
    %9 = vector.load %arg3[%c1, %c0_12] : memref<8x128xf32, #tpu.memory_space<vmem>>, vector<1x128xf32>
    %c2 = arith.constant 2 : index
    %c0_13 = arith.constant 0 : index
    %10 = vector.load %arg3[%c2, %c0_13] : memref<8x128xf32, #tpu.memory_space<vmem>>, vector<1x8xf32>
    %11 = arith.truncf %4 : vector<32x32xf32> to vector<32x32xbf16>
    %cst_14 = arith.constant dense<0.000000e+00> : vector<32x128xf32>
    %12 = tpu.matmul %11, %5, %cst_14 {dimension_numbers = #tpu.dot_dimension_numbers<[1], [0], [0], [1], [0, 0, 1, 1], [], []>} : vector<32x32xbf16>, vector<32x128xbf16>, vector<32x128xf32> -> vector<32x128xf32>
    %13 = vector.broadcast %8 : vector<1x128xf32> to vector<32x128xf32>
    %14 = arith.addf %12, %13 : vector<32x128xf32>
    %cst_15 = arith.constant 0.000000e+00 : f32
    %15 = vector.broadcast %cst_15 : f32 to vector<32x128xf32>
    %16 = arith.maximumf %14, %15 : vector<32x128xf32>
    %17 = arith.truncf %16 : vector<32x128xf32> to vector<32x128xbf16>
    %cst_16 = arith.constant dense<0.000000e+00> : vector<32x128xf32>
    %18 = tpu.matmul %17, %6, %cst_16 {dimension_numbers = #tpu.dot_dimension_numbers<[1], [0], [0], [1], [0, 0, 1, 1], [], []>} : vector<32x128xbf16>, vector<128x128xbf16>, vector<32x128xf32> -> vector<32x128xf32>
    %19 = vector.broadcast %9 : vector<1x128xf32> to vector<32x128xf32>
    %20 = arith.addf %18, %19 : vector<32x128xf32>
    %cst_17 = arith.constant 0.000000e+00 : f32
    %21 = vector.broadcast %cst_17 : f32 to vector<32x128xf32>
    %22 = arith.maximumf %20, %21 : vector<32x128xf32>
    %23 = arith.truncf %22 : vector<32x128xf32> to vector<32x128xbf16>
    %cst_18 = arith.constant dense<0.000000e+00> : vector<32x128xf32>
    %24 = tpu.matmul %23, %7, %cst_18 {dimension_numbers = #tpu.dot_dimension_numbers<[1], [0], [0], [1], [0, 0, 1, 1], [], []>} : vector<32x128xbf16>, vector<128x128xbf16>, vector<32x128xf32> -> vector<32x128xf32>
    %25 = vector.extract_strided_slice %24 {offsets = [0, 0], sizes = [32, 8], strides = [1, 1]} : vector<32x128xf32> to vector<32x8xf32>
    %26 = vector.broadcast %10 : vector<1x8xf32> to vector<32x8xf32>
    %27 = arith.addf %25, %26 : vector<32x8xf32>
    %28 = tpu.iota {dimensions = array<i32: 1>} : vector<32x8xi32>
    %c5_i32 = arith.constant 5 : i32
    %29 = vector.broadcast %c5_i32 : i32 to vector<32x8xi32>
    %30 = arith.cmpi slt, %28, %29 : vector<32x8xi32>
    %cst_19 = arith.constant 0xFF800000 : f32
    %31 = vector.broadcast %cst_19 : f32 to vector<32x8xf32>
    %32 = arith.select %30, %27, %31 : vector<32x8xi1>, vector<32x8xf32>
    %cst_20 = arith.constant dense<0xFF800000> : vector<32xf32>
    %33 = vector.multi_reduction <maximumf>, %32, %cst_20 [1] : vector<32x8xf32> to vector<32xf32>
    %34 = vector.shape_cast %33 : vector<32xf32> to vector<32x1xf32>
    %35 = vector.broadcast %34 : vector<32x1xf32> to vector<32x8xf32>
    %36 = arith.subf %32, %35 : vector<32x8xf32>
    %37 = math.exp %36 : vector<32x8xf32>
    %cst_21 = arith.constant dense<0.000000e+00> : vector<32xf32>
    %38 = vector.multi_reduction <add>, %37, %cst_21 [1] : vector<32x8xf32> to vector<32xf32>
    %39 = vector.shape_cast %38 : vector<32xf32> to vector<32x1xf32>
    %40 = math.log %39 : vector<32x1xf32>
    %41 = vector.broadcast %40 : vector<32x1xf32> to vector<32x8xf32>
    %42 = arith.subf %36, %41 : vector<32x8xf32>
    %43 = vector.extract_strided_slice %42 {offsets = [0, 0], sizes = [32, 5], strides = [1, 1]} : vector<32x8xf32> to vector<32x5xf32>
    %c0_22 = arith.constant 0 : index
    %c0_23 = arith.constant 0 : index
    %44 = vector.load %arg4[%c0_22, %c0_23] : memref<32x5xf32, #tpu.memory_space<vmem>>, vector<32x5xf32>
    tpu.vector_store %arg4[%c0_22, %c0_23], %43 {strides = array<i32>} : memref<32x5xf32, #tpu.memory_space<vmem>>, vector<32x5xf32>,
    return
  }
  func.func @transform_0(%arg0: i32) -> (i32, i32) {
    %c0_i32 = arith.constant 0 : i32
    %c0_i32_0 = arith.constant 0 : i32
    return %arg0, %c0_i32 : i32, i32
  }
  func.func @transform_1(%arg0: i32) -> (i32, i32) {
    %c0_i32 = arith.constant 0 : i32
    %c0_i32_0 = arith.constant 0 : i32
    %c0_i32_1 = arith.constant 0 : i32
    return %c0_i32, %c0_i32_0 : i32, i32
  }
  func.func @transform_2(%arg0: i32) -> (i32, i32) {
    %c0_i32 = arith.constant 0 : i32
    %c0_i32_0 = arith.constant 0 : i32
    %c0_i32_1 = arith.constant 0 : i32
    return %c0_i32, %c0_i32_0 : i32, i32
  }
  func.func @transform_3(%arg0: i32) -> (i32, i32) {
    %c0_i32 = arith.constant 0 : i32
    %c0_i32_0 = arith.constant 0 : i32
    return %arg0, %c0_i32 : i32, i32
  }
}

</mosaic_0001>

<llo_original>
// kernel: tpu_custom_call.1
$region0: #{tpu_custom_call.1}
  #allocation0 [shape = 'u32[]', space=smem, size = 0x4, offset = 0x4, fixed_abs, tag = 'smem constant byte address 0x4 - core index']
  #allocation1 [shape = 'u32[72,128]{1,0:T(1,128)}', space=vmem, size = 0x9000, scoped, tag = 'internal scratch']
  #allocation2 [shape = 'f32[32,32]{1,0:T(8,128)}', space=vmem, size = 0x4000, scoped, tag = 'scratch operand']
  %s0 = inlined_call_operand.vmem [shape: f32[64,30], index: 0, kind: input, shape index: {}]
  %s1 = inlined_call_operand.hbm [shape: bf16[288,128], index: 1, kind: input, shape index: {}]
  %s2 = inlined_call_operand.vmem [shape: f32[8,128], index: 2, kind: input, shape index: {}]
  %s3 = inlined_call_operand.vmem [shape: f32[64,5], index: 3, kind: output, shape index: {}]
  %s4 = sld [smem:[#allocation0]]
  $region49: #{tpu_custom_call.1} parent=0
    _
  %s6 = ssub.s32 1, %s4
  %s7 = scalar_select 0, %s6, %s4
  $region1: #{tpu_custom_call.1} parent=0
    #allocation3 [shape = 'u8[73728]{0}', space=vmem, size = 0x12000, scoped, tag = 'input window, operand 1, single buffered']
    #allocation4 [shape = 's32[2]{0}', space=sflag, size = 0x8, scoped, tag = 'scoped memory for tpu_custom_call.1']
    %8 = vsyncpa [#allocation4], 0
    loop: start=0, step=1, limit=4
    $region2: #{tpu_custom_call.1} parent=1 // loop_pre_header
      _
    $region3: #{tpu_custom_call.1} parent=1 // loop_header
      %s10 = sphi 0, %s14
      %p11 = scmp.ge.s32.totalorder %s10, 4
      %s20 = sphi 0, %s22
      %s23 = sphi 0, %s20
      %s24 = sphi 0, %s23
      %s40 = sphi 0, %s24
      %s44 = sphi 0, %s44
      %s46 = sphi 0, %s44
      %s47 = sphi 0, %s46
      %s61 = sphi 0, %s47
      %s65 = sphi 0, %s65
      %s67 = sphi 0, %s65
      %s68 = sphi 0, %s67
      %s82 = sphi 0, %s68
      %s88 = sphi 0, %s90
      %s91 = sphi 0, %s88
      %s92 = sphi 0, %s91
      %s108 = sphi 0, %s92
    $region4: #{tpu_custom_call.1} parent=1 // loop_header_branch
      %13 = sbr.rel (%p11) target = $region8
    $region5: #{tpu_custom_call.1} parent=1 // loop_body
      %s15 = ssub.s32 %s10, 1
      %s16 = ssub.s32 %s10, 2
      %s17 = sadd.s32 %s10, 1
      %s18 = ssub.s32 %s10, %s17
      %p19 = scmp.eq.s32.totalorder %s18, 0
      %s21 = sadd.s32 %s20, 1
      %s22 = scalar_select %p19, %s20, %s21
      %p25 = pneg %p19
      %p26 = scmp.eq.s32.totalorder %s10, 1
      %p27 = por %p25, %p26
      %p28 = scmp.ne.s32.totalorder %s20, %s23
      %p29 = scmp.eq.s32.totalorder %s10, 0
      %p30 = por %p28, %p29
      %p31 = scmp.ne.s32.totalorder %s20, %s23
      %p32 = scmp.eq.s32.totalorder %s15, 1
      %p33 = por %p31, %p32
      %p34 = scmp.ne.s32.totalorder %s23, %s24
      %p35 = scmp.eq.s32.totalorder %s15, 0
      %p36 = por %p34, %p35
      %p37 = scmp.ne.s32.totalorder %s23, %s24
      %p38 = scmp.eq.s32.totalorder %s16, 1
      %p39 = por %p37, %p38
      %p41 = scmp.ne.s32.totalorder %s24, %s40
      %p42 = scmp.eq.s32.totalorder %s16, 0
      %p43 = por %p41, %p42
      %s45 = sadd.s32 %s44, 1
      %p48 = scmp.eq.s32.totalorder %s10, 1
      %p49 = scmp.ne.s32.totalorder %s44, %s46
      %p50 = scmp.eq.s32.totalorder %s10, 0
      %p51 = por %p49, %p50
      %p52 = scmp.ne.s32.totalorder %s44, %s46
      %p53 = scmp.eq.s32.totalorder %s15, 1
      %p54 = por %p52, %p53
      %p55 = scmp.ne.s32.totalorder %s46, %s47
      %p56 = scmp.eq.s32.totalorder %s15, 0
      %p57 = por %p55, %p56
      %p58 = scmp.ne.s32.totalorder %s46, %s47
      %p59 = scmp.eq.s32.totalorder %s16, 1
      %p60 = por %p58, %p59
      %p62 = scmp.ne.s32.totalorder %s47, %s61
      %p63 = scmp.eq.s32.totalorder %s16, 0
      %p64 = por %p62, %p63
      %s66 = sadd.s32 %s65, 1
      %p69 = scmp.eq.s32.totalorder %s10, 1
      %p70 = scmp.ne.s32.totalorder %s65, %s67
      %p71 = scmp.eq.s32.totalorder %s10, 0
      %p72 = por %p70, %p71
      %p73 = scmp.ne.s32.totalorder %s65, %s67
      %p74 = scmp.eq.s32.totalorder %s15, 1
      %p75 = por %p73, %p74
      %p76 = scmp.ne.s32.totalorder %s67, %s68
      %p77 = scmp.eq.s32.totalorder %s15, 0
      %p78 = por %p76, %p77
      %p79 = scmp.ne.s32.totalorder %s67, %s68
      %p80 = scmp.eq.s32.totalorder %s16, 1
      %p81 = por %p79, %p80
      %p83 = scmp.ne.s32.totalorder %s68, %s82
      %p84 = scmp.eq.s32.totalorder %s16, 0
      %p85 = por %p83, %p84
      %s86 = ssub.s32 %s10, %s17
      %p87 = scmp.eq.s32.totalorder %s86, 0
      %s89 = sadd.s32 %s88, 1
      %s90 = scalar_select %p87, %s88, %s89
      %p93 = pneg %p87
      %p94 = scmp.eq.s32.totalorder %s10, 1
      %p95 = por %p93, %p94
      %p96 = scmp.ne.s32.totalorder %s88, %s91
      %p97 = scmp.eq.s32.totalorder %s10, 0
      %p98 = por %p96, %p97
      %p99 = scmp.ne.s32.totalorder %s88, %s91
      %p100 = scmp.eq.s32.totalorder %s15, 1
      %p101 = por %p99, %p100
      %p102 = scmp.ne.s32.totalorder %s91, %s92
      %p103 = scmp.eq.s32.totalorder %s15, 0
      %p104 = por %p102, %p103
      %p105 = scmp.ne.s32.totalorder %s91, %s92
      %p106 = scmp.eq.s32.totalorder %s16, 1
      %p107 = por %p105, %p106
      %p109 = scmp.ne.s32.totalorder %s92, %s108
      %p110 = scmp.eq.s32.totalorder %s16, 0
      %p111 = por %p109, %p110
      %p112 = scmp.le.s32.totalorder 1, %s10
      %p113 = scmp.lt.s32.totalorder %s10, 3
      %p114 = pnand %p112, %p113
      %p115 = pneg %p114
      // Predicated region
      $region9: #{tpu_custom_call.1} parent=5 // pred_check
        _
      $region10: #{tpu_custom_call.1} parent=5 // pred_check_branch
        %117 = sbr.rel (%p114) target = $region12
      $region11: #{tpu_custom_call.1} parent=5 // pred_region
        %s118 = ssub.s32 %s10, 1
        // Predicated region
        $region13: #{tpu_custom_call.1} parent=11 // pred_check
          %p119 = pneg %p57
        $region14: #{tpu_custom_call.1} parent=11 // pred_check_branch
          %121 = sbr.rel (%p119) target = $region16
        $region15: #{tpu_custom_call.1} parent=11 // pred_region
          %123 = vsyncadd [#allocation4], 0
          %s124 = sshll.u32 %s1, 4
          %s125 = int_to_ptr.hbm [resolvable:$true] %s124
          %s126 = sshll.u32 [#allocation3], 4
          %s127 = int_to_ptr.vmem [resolvable:$true] %s126
          %132 = dma.hbm_to_vmem [thread:$0]  %s125, 2304, %s127, [#allocation4], 64, 64, 4
        $region16: #{tpu_custom_call.1} parent=11 // pred_fallthru
          _
        // Predicated region
        $region17: #{tpu_custom_call.1} parent=11 // pred_check
          %p133 = pneg %p78
        $region18: #{tpu_custom_call.1} parent=11 // pred_check_branch
          %135 = sbr.rel (%p133) target = $region20
        $region19: #{tpu_custom_call.1} parent=11 // pred_region
          _
        $region20: #{tpu_custom_call.1} parent=11 // pred_fallthru
          _
      $region12: #{tpu_custom_call.1} parent=5 // pred_fallthru
        _
      %p136 = scmp.lt.s32.totalorder %s10, 2
      // Predicated region
      $region21: #{tpu_custom_call.1} parent=5 // pred_check
        %p137 = pneg %p136
      $region22: #{tpu_custom_call.1} parent=5 // pred_check_branch
        %139 = sbr.rel (%p137) target = $region24
      $region23: #{tpu_custom_call.1} parent=5 // pred_region
        // Predicated region
        $region25: #{tpu_custom_call.1} parent=23 // pred_check
          %p140 = pneg %p30
        $region26: #{tpu_custom_call.1} parent=23 // pred_check_branch
          %142 = sbr.rel (%p140) target = $region28
        $region27: #{tpu_custom_call.1} parent=23 // pred_region
          %s143 = smul.u32 4, %s10
          %p144 = scmp.lt.s32.totalorder %s143, 7
          %s145 = scalar_select %p144, %s143, 7
          %s146 = smul.addr %s145, 8
          %s147 = scalar_lea.vmem %s0, %s146
          %s148 = smul.u32 4, %s10
        $region28: #{tpu_custom_call.1} parent=23 // pred_fallthru
          _
      $region24: #{tpu_custom_call.1} parent=5 // pred_fallthru
        _
      %p149 = scmp.le.s32.totalorder 1, %s10
      %p150 = scmp.lt.s32.totalorder %s10, 3
      %p151 = pnand %p149, %p150
      %p152 = pneg %p151
      // Predicated region
      $region29: #{tpu_custom_call.1} parent=5 // pred_check
        _
      $region30: #{tpu_custom_call.1} parent=5 // pred_check_branch
        %154 = sbr.rel (%p151) target = $region32
      $region31: #{tpu_custom_call.1} parent=5 // pred_region
        %s155 = ssub.s32 %s10, 1
        // Predicated region
        $region33: #{tpu_custom_call.1} parent=31 // pred_check
          %p156 = pneg %p57
        $region34: #{tpu_custom_call.1} parent=31 // pred_check_branch
          %158 = sbr.rel (%p156) target = $region36
        $region35: #{tpu_custom_call.1} parent=31 // pred_region
          %160 = dma.done [#allocation4], 2304
        $region36: #{tpu_custom_call.1} parent=31 // pred_fallthru
          _
        %s161 = smul.u32 4, %s15
        %p162 = scmp.lt.s32.totalorder %s161, 7
        %s163 = scalar_select %p162, %s161, 7
        %s164 = smul.addr %s163, 8
        %s165 = scalar_lea.vmem %s0, %s164
        %p166 = pneg %p36
        %p167 = pneg %p33
        %p168 = pneg %p57
        %p169 = pneg %p54
        %p170 = pneg %p78
        %p171 = pneg %p75
        %p172 = pneg %p104
        %p173 = pneg %p101
        %s174 = smul.u32 4, %s15
        %p175 = scmp.lt.s32.totalorder %s174, 7
        %s176 = scalar_select %p175, %s174, 7
        %s177 = smul.addr %s176, 8
        %s178 = scalar_lea.vmem %s3, %s177
        %s179 = smul.u32 4, %s15
        %p180 = scmp.lt.s32.totalorder %s179, 7
        %s181 = scalar_select %p180, %s179, 7
        %s182 = smul.addr %s181, 8
        %s183 = scalar_lea.vmem %s0, %s182
        %s184 = smul.u32 4, %s15
        %s185 = smul.u32 4, %s15
        %p186 = scmp.lt.s32.totalorder %s185, 7
        %s187 = scalar_select %p186, %s185, 7
        %s188 = smul.addr %s187, 8
        %s189 = scalar_lea.vmem %s3, %s188
        %s190 = smul.u32 4, %s15
        %vm192 = vcmask 261360
        %193 = vst.msk [vmem:[#allocation2] sm:$0xff] %vm192, 0.0
        %194 = vst.msk [vmem:[#allocation2 + $0x8] sm:$0xff] %vm192, 0.0
        %195 = vst.msk [vmem:[#allocation2 + $0x10] sm:$0xff] %vm192, 0.0
        %196 = vst.msk [vmem:[#allocation2 + $0x18] sm:$0xff] %vm192, 0.0
        %v197 = vld [vmem:[%s183] sm:$0xff]
        %v198 = vld [vmem:[%s183 + $0x8] sm:$0xff]
        %v199 = vld [vmem:[%s183 + $0x10] sm:$0xff]
        %v200 = vld [vmem:[%s183 + $0x18] sm:$0xff]
        %vm201 = vcmask 244736
        %202 = vst.msk [vmem:[#allocation2] sm:$0xff] %vm201, %v197
        %203 = vst.msk [vmem:[#allocation2 + $0x8] sm:$0xff] %vm201, %v198
        %204 = vst.msk [vmem:[#allocation2 + $0x10] sm:$0xff] %vm201, %v199
        %205 = vst.msk [vmem:[#allocation2 + $0x18] sm:$0xff] %vm201, %v200
        %v206 = vld [vmem:[#allocation2] sm:$0xff]
        %v207 = vld [vmem:[#allocation2 + $0x8] sm:$0xff]
        %v208 = vld [vmem:[#allocation2 + $0x10] sm:$0xff]
        %v209 = vld [vmem:[#allocation2 + $0x18] sm:$0xff]
        %v210 = vld [vmem:[#allocation3] sm:$0xf]
        %v211 = vld [vmem:[#allocation3 + $0x4] sm:$0xf]
        %v212 = vld [vmem:[#allocation3 + $0x8] sm:$0xf]
        %v213 = vld [vmem:[#allocation3 + $0xc] sm:$0xf]
        %v214 = vld [vmem:[#allocation3 + $0x10] sm:$0xf]
        %v215 = vld [vmem:[#allocation3 + $0x14] sm:$0xf]
        %v216 = vld [vmem:[#allocation3 + $0x18] sm:$0xf]
        %v217 = vld [vmem:[#allocation3 + $0x1c] sm:$0xf]
        %v218 = vld [vmem:[#allocation3 + $0x20] sm:$0xf]
        %v219 = vld [vmem:[#allocation3 + $0x24] sm:$0xf]
        %v220 = vld [vmem:[#allocation3 + $0x28] sm:$0xf]
        %v221 = vld [vmem:[#allocation3 + $0x2c] sm:$0xf]
        %v222 = vld [vmem:[#allocation3 + $0x30] sm:$0xf]
        %v223 = vld [vmem:[#allocation3 + $0x34] sm:$0xf]
        %v224 = vld [vmem:[#allocation3 + $0x38] sm:$0xf]
        %v225 = vld [vmem:[#allocation3 + $0x3c] sm:$0xf]
        %v226 = vld [vmem:[#allocation3 + $0x40] sm:$0xf]
        %v227 = vld [vmem:[#allocation3 + $0x44] sm:$0xf]
        %v228 = vld [vmem:[#allocation3 + $0x48] sm:$0xf]
        %v229 = vld [vmem:[#allocation3 + $0x4c] sm:$0xf]
        %v230 = vld [vmem:[#allocation3 + $0x50] sm:$0xf]
        %v231 = vld [vmem:[#allocation3 + $0x54] sm:$0xf]
        %v232 = vld [vmem:[#allocation3 + $0x58] sm:$0xf]
        %v233 = vld [vmem:[#allocation3 + $0x5c] sm:$0xf]
        %v234 = vld [vmem:[#allocation3 + $0x60] sm:$0xf]
        %v235 = vld [vmem:[#allocation3 + $0x64] sm:$0xf]
        %v236 = vld [vmem:[#allocation3 + $0x68] sm:$0xf]
        %v237 = vld [vmem:[#allocation3 + $0x6c] sm:$0xf]
        %v238 = vld [vmem:[#allocation3 + $0x70] sm:$0xf]
        %v239 = vld [vmem:[#allocation3 + $0x74] sm:$0xf]
        %v240 = vld [vmem:[#allocation3 + $0x78] sm:$0xf]
        %v241 = vld [vmem:[#allocation3 + $0x7c] sm:$0xf]
        %v242 = vld [vmem:[#allocation3 + $0x80] sm:$0xf]
        %v243 = vld [vmem:[#allocation3 + $0x84] sm:$0xf]
        %v244 = vld [vmem:[#allocation3 + $0x88] sm:$0xf]
        %v245 = vld [vmem:[#allocation3 + $0x8c] sm:$0xf]
        %v246 = vld [vmem:[%s2] sm:$0x1]
        %v247 = vld [vmem:[%s2 + $0x1] sm:$0x1]
        %v248 = vld [vmem:[%s2 + $0x2] sm:$0x1]
        %v249 = vpack.c.bf16 %v207, %v206
        %v250 = vpack.c.bf16 %v209, %v208
        %v251 = vperm.slane %v246, 0
        %v256 = vunpack.c.l.b16 %v210
        %v257 = vunpack.c.l.b16 %v211
        %v258 = vunpack.c.l.b16 %v212
        %v259 = vunpack.c.l.b16 %v213
        %v260 = vpack.c.b16 %v257, %v256
        %v261 = vpack.c.b16 %v259, %v258
        %vm264 = vcmask 261120
        %v266 = vsel %vm264, %v249, 0
        %v269 = vsel %vm264, %v250, 0
        %271 = vmatpush.bf16.msra.mxu0 0
        %272 = vmatpush.bf16.msra.mxu0 0
        %273 = vmatpush.bf16.msra.mxu0 0
        %274 = vmatpush.bf16.msra.mxu0 0
        %275 = vmatpush.bf16.msra.mxu0 0
        %276 = vmatpush.bf16.msra.mxu0 0
        %277 = vmatpush.bf16.msra.mxu0 %v261
        %278 = vmatpush.bf16.msra.mxu0 %v260
        %279 = vmatmul.bf16.gmra.mxu0 %v266
        %v280 = vpop.f32.mrf.mxu0
        %v281 = vadd.f32 %v251, %v280
        %v282 = vpop.f32.mrf.mxu0
        %v283 = vadd.f32 %v251, %v282
        %284 = vmatmul.bf16.gmra.mxu0 %v269
        %v285 = vpop.f32.mrf.mxu0
        %v286 = vadd.f32 %v251, %v285
        %v287 = vpop.f32.mrf.mxu0
        %v288 = vadd.f32 %v251, %v287
        %289 = vdwg.mxu0
        %v290 = vmax.f32 %v281, 0.0
        %v291 = vmax.f32 %v283, 0.0
        %v292 = vmax.f32 %v286, 0.0
        %v293 = vmax.f32 %v288, 0.0
        %v294 = vpack.c.bf16 %v291, %v290
        %v295 = vpack.c.bf16 %v293, %v292
        %v296 = vperm.slane %v247, 0
        %v313 = vunpack.c.l.b16 %v214
        %v314 = vunpack.c.l.b16 %v215
        %v315 = vunpack.c.l.b16 %v216
        %v316 = vunpack.c.l.b16 %v217
        %v317 = vunpack.c.l.b16 %v218
        %v318 = vunpack.c.l.b16 %v219
        %v319 = vunpack.c.l.b16 %v220
        %v320 = vunpack.c.l.b16 %v221
        %v321 = vunpack.c.l.b16 %v222
        %v322 = vunpack.c.l.b16 %v223
        %v323 = vunpack.c.l.b16 %v224
        %v324 = vunpack.c.l.b16 %v225
        %v325 = vunpack.c.l.b16 %v226
        %v326 = vunpack.c.l.b16 %v227
        %v327 = vunpack.c.l.b16 %v228
        %v328 = vunpack.c.l.b16 %v229
        %v329 = vpack.c.b16 %v314, %v313
        %v330 = vpack.c.b16 %v316, %v315
        %v331 = vpack.c.b16 %v318, %v317
        %v332 = vpack.c.b16 %v320, %v319
        %v333 = vpack.c.b16 %v322, %v321
        %v334 = vpack.c.b16 %v324, %v323
        %v335 = vpack.c.b16 %v326, %v325
        %v336 = vpack.c.b16 %v328, %v327
        %345 = vmatpush.bf16.msra.mxu0 %v336
        %346 = vmatpush.bf16.msra.mxu0 %v335
        %347 = vmatpush.bf16.msra.mxu0 %v334
        %348 = vmatpush.bf16.msra.mxu0 %v333
        %349 = vmatpush.bf16.msra.mxu0 %v332
        %350 = vmatpush.bf16.msra.mxu0 %v331
        %351 = vmatpush.bf16.msra.mxu0 %v330
        %352 = vmatpush.bf16.msra.mxu0 %v329
        %353 = vmatmul.bf16.gmra.mxu0 %v294
        %v354 = vpop.f32.mrf.mxu0
        %v355 = vadd.f32 %v296, %v354
        %v356 = vpop.f32.mrf.mxu0
        %v357 = vadd.f32 %v296, %v356
        %358 = vmatmul.bf16.gmra.mxu0 %v295
        %v359 = vpop.f32.mrf.mxu0
        %v360 = vadd.f32 %v296, %v359
        %v361 = vpop.f32.mrf.mxu0
        %v362 = vadd.f32 %v296, %v361
        %363 = vdwg.mxu0
        %v364 = vmax.f32 %v355, 0.0
        %v365 = vmax.f32 %v357, 0.0
        %v366 = vmax.f32 %v360, 0.0
        %v367 = vmax.f32 %v362, 0.0
        %v368 = vpack.c.bf16 %v365, %v364
        %v369 = vpack.c.bf16 %v367, %v366
        %v386 = vunpack.c.l.b16 %v230
        %v387 = vunpack.c.l.b16 %v231
        %v388 = vunpack.c.l.b16 %v232
        %v389 = vunpack.c.l.b16 %v233
        %v390 = vunpack.c.l.b16 %v234
        %v391 = vunpack.c.l.b16 %v235
        %v392 = vunpack.c.l.b16 %v236
        %v393 = vunpack.c.l.b16 %v237
        %v394 = vunpack.c.l.b16 %v238
        %v395 = vunpack.c.l.b16 %v239
        %v396 = vunpack.c.l.b16 %v240
        %v397 = vunpack.c.l.b16 %v241
        %v398 = vunpack.c.l.b16 %v242
        %v399 = vunpack.c.l.b16 %v243
        %v400 = vunpack.c.l.b16 %v244
        %v401 = vunpack.c.l.b16 %v245
        %v402 = vpack.c.b16 %v387, %v386
        %v403 = vpack.c.b16 %v389, %v388
        %v404 = vpack.c.b16 %v391, %v390
        %v405 = vpack.c.b16 %v393, %v392
        %v406 = vpack.c.b16 %v395, %v394
        %v407 = vpack.c.b16 %v397, %v396
        %v408 = vpack.c.b16 %v399, %v398
        %v409 = vpack.c.b16 %v401, %v400
        %418 = vmatpush.bf16.msra.mxu0 %v409
        %419 = vmatpush.bf16.msra.mxu0 %v408
        %420 = vmatpush.bf16.msra.mxu0 %v407
        %421 = vmatpush.bf16.msra.mxu0 %v406
        %422 = vmatpush.bf16.msra.mxu0 %v405
        %423 = vmatpush.bf16.msra.mxu0 %v404
        %424 = vmatpush.bf16.msra.mxu0 %v403
        %425 = vmatpush.bf16.msra.mxu0 %v402
        %426 = vmatmul.bf16.gmra.mxu0 %v368
        %v427 = vpop.f32.mrf.mxu0
        %v428 = vadd.f32 0.0, %v427
        %v429 = vpop.f32.mrf.mxu0
        %v430 = vadd.f32 0.0, %v429
        %431 = vmatmul.bf16.gmra.mxu0 %v369
        %v432 = vpop.f32.mrf.mxu0
        %v433 = vadd.f32 0.0, %v432
        %v434 = vpop.f32.mrf.mxu0
        %v435 = vadd.f32 0.0, %v434
        %436 = vdwg.mxu0
        %v437 = vperm.slane %v248, 0
        %v438 = vadd.f32 %v428, %v437
        %v439 = vadd.f32 %v430, %v437
        %v440 = vadd.f32 %v433, %v437
        %v441 = vadd.f32 %v435, %v437
        %v442 = vlaneseq
        %v443 = vand.u32 %v442, 127
        %vm444 = vcmp.lt.s32.totalorder %v443, 5
        %v445 = vsel %vm444, %v438, -inf
        %v446 = vsel %vm444, %v439, -inf
        %v447 = vsel %vm444, %v440, -inf
        %v448 = vsel %vm444, %v441, -inf
        %vm449 = vcmask 64512
        %v450 = vsel %vm449, %v445, -inf
        %451 = vmax.xlane.f32.xlu0 %v450
        %v452 = vpop.xlane.xlu0 %451
        %v453 = vsel %vm449, %v446, -inf
        %454 = vmax.xlane.f32.xlu0 %v453
        %v455 = vpop.xlane.xlu0 %454
        %v456 = vsel %vm449, %v447, -inf
        %457 = vmax.xlane.f32.xlu0 %v456
        %v458 = vpop.xlane.xlu0 %457
        %v459 = vsel %vm449, %v448, -inf
        %460 = vmax.xlane.f32.xlu0 %v459
        %v461 = vpop.xlane.xlu0 %460
        %v462 = vsub.f32 %v445, %v452
        %v463 = vsub.f32 %v446, %v455
        %v464 = vsub.f32 %v447, %v458
        %v465 = vsub.f32 %v448, %v461
        %v466 = vmul.f32 %v462, 1.442695
        %v467 = vpow.pop %v466
        %v468 = vmul.f32 %v463, 1.442695
        %v469 = vpow.pop %v468
        %v470 = vmul.f32 %v464, 1.442695
        %v471 = vpow.pop %v470
        %v472 = vmul.f32 %v465, 1.442695
        %v473 = vpow.pop %v472
        %v474 = vsel %vm449, %v467, 0.0
        %475 = vadd.xlane.f32.xlu0 %v474
        %v476 = vpop.xlane.xlu0 %475
        %v477 = vsel %vm449, %v469, 0.0
        %478 = vadd.xlane.f32.xlu0 %v477
        %v479 = vpop.xlane.xlu0 %478
        %v480 = vsel %vm449, %v471, 0.0
        %481 = vadd.xlane.f32.xlu0 %v480
        %v482 = vpop.xlane.xlu0 %481
        %v483 = vsel %vm449, %v473, 0.0
        %484 = vadd.xlane.f32.xlu0 %v483
        %v485 = vpop.xlane.xlu0 %484
        %v486 = vlog2.pop %v476
        %v487 = vmul.f32 %v486, 0.6931472
        %v488 = vlog2.pop %v479
        %v489 = vmul.f32 %v488, 0.6931472
        %v490 = vlog2.pop %v482
        %v491 = vmul.f32 %v490, 0.6931472
        %v492 = vlog2.pop %v485
        %v493 = vmul.f32 %v492, 0.6931472
        %v494 = vsub.f32 %v462, %v487
        %v495 = vsub.f32 %v463, %v489
        %v496 = vsub.f32 %v464, %v491
        %v497 = vsub.f32 %v465, %v493
        %vm498 = vcmask 39936
        %499 = vst.msk [vmem:[%s189] sm:$0xff] %vm498, %v494
        %500 = vst.msk [vmem:[%s189 + $0x8] sm:$0xff] %vm498, %v495
        %501 = vst.msk [vmem:[%s189 + $0x10] sm:$0xff] %vm498, %v496
        %502 = vst.msk [vmem:[%s189 + $0x18] sm:$0xff] %vm498, %v497
        %s503 = smul.u32 4, %s15
        %p504 = scmp.lt.s32.totalorder %s503, 7
        %s505 = scalar_select %p504, %s503, 7
        %s506 = smul.addr %s505, 8
        %s507 = scalar_lea.vmem %s3, %s506
        // Predicated region
        $region37: #{tpu_custom_call.1} parent=31 // pred_check
          %p508 = pneg %p101
        $region38: #{tpu_custom_call.1} parent=31 // pred_check_branch
          %510 = sbr.rel (%p508) target = $region40
        $region39: #{tpu_custom_call.1} parent=31 // pred_region
          %s511 = smul.u32 4, %s15
        $region40: #{tpu_custom_call.1} parent=31 // pred_fallthru
          _
      $region32: #{tpu_custom_call.1} parent=5 // pred_fallthru
        _
      %p512 = scmp.le.s32.totalorder 2, %s10
      // Predicated region
      $region41: #{tpu_custom_call.1} parent=5 // pred_check
        %p513 = pneg %p512
      $region42: #{tpu_custom_call.1} parent=5 // pred_check_branch
        %515 = sbr.rel (%p513) target = $region44
      $region43: #{tpu_custom_call.1} parent=5 // pred_region
        %s516 = ssub.s32 %s10, 2
        // Predicated region
        $region45: #{tpu_custom_call.1} parent=43 // pred_check
          %p517 = pneg %p107
        $region46: #{tpu_custom_call.1} parent=43 // pred_check_branch
          %519 = sbr.rel (%p517) target = $region48
        $region47: #{tpu_custom_call.1} parent=43 // pred_region
          %s520 = smul.u32 4, %s16
          %p521 = scmp.lt.s32.totalorder %s520, 7
          %s522 = scalar_select %p521, %s520, 7
          %s523 = smul.addr %s522, 8
          %s524 = scalar_lea.vmem %s3, %s523
        $region48: #{tpu_custom_call.1} parent=43 // pred_fallthru
          _
      $region44: #{tpu_custom_call.1} parent=5 // pred_fallthru
        _
    $region6: #{tpu_custom_call.1} parent=1 // loop_footer
      %s14 = sadd.s32 1, %s10
    $region7: #{tpu_custom_call.1} parent=1 // loop_footer_branch
      %9 = sbr.rel target = $region3
    $region8: #{tpu_custom_call.1} parent=1 // loop_exit
      _
    %525 = vsyncpa [#allocation4], 1
    %s526 = scalar_lea.sflag [#allocation4], 1
    %527 = vsyncpa %s526, 1

</llo_original>
